<compile_context>
chip_gen: v7x
topology: tpu7x:2x2x1
jax: 0.10.0
libtpu: 0.0.40
codegen_flags: <defaults>
</compile_context>

<pallas_src>
import functools

import jax
import jax.numpy as jnp
from jax.experimental import pallas as pl
from jax.experimental.pallas import tpu as pltpu


# ----------------------------------------------------------------------------
# Kernels
# ----------------------------------------------------------------------------

def _mlp_fused_kernel(x_ref, w1_ref, b1_ref, w2_ref, b2_ref, o_ref, *,
                      act_dtype):
    # Full intermediate dim resident: single pass, no accumulator scratch.
    # x_ref: (tm, H); w1_ref: (H, I); b1_ref: (1, I); w2_ref: (I, H);
    # b2_ref: (1, H); o_ref: (tm, H)
    h = jnp.dot(x_ref[...], w1_ref[...], preferred_element_type=jnp.float32)
    h = h.astype(act_dtype) + b1_ref[...].astype(act_dtype)
    h = jax.nn.gelu(h, approximate=True)          # GPT-2 "gelu_new"
    out = jnp.dot(h.astype(w2_ref.dtype), w2_ref[...],
                  preferred_element_type=jnp.float32)
    o_ref[...] = (out + b2_ref[...]).astype(o_ref.dtype)


def _mlp_stream_kernel(x_ref, w1_ref, b1_ref, w2_ref, b2_ref, o_ref, acc_ref,
                       *, act_dtype):
    # Streaming over the intermediate dim I (reduction axis of c_proj).
    # x_ref: (tm, H); w1_ref: (H, ti); b1_ref: (1, ti); w2_ref: (ti, H);
    # b2_ref: (1, H); o_ref: (tm, H); acc_ref: (tm, H) fp32 scratch.
    k = pl.program_id(1)

    @pl.when(k == 0)
    def _init():
        acc_ref[...] = jnp.zeros_like(acc_ref)

    h = jnp.dot(x_ref[...], w1_ref[...], preferred_element_type=jnp.float32)
    h = h.astype(act_dtype) + b1_ref[...].astype(act_dtype)
    h = jax.nn.gelu(h, approximate=True)          # GPT-2 "gelu_new"
    acc_ref[...] += jnp.dot(h.astype(w2_ref.dtype), w2_ref[...],
                            preferred_element_type=jnp.float32)

    @pl.when(k == pl.num_programs(1) - 1)
    def _finalize():
        o_ref[...] = (acc_ref[...] + b2_ref[...]).astype(o_ref.dtype)


# ----------------------------------------------------------------------------
# Tile / VMEM selection helpers
# ----------------------------------------------------------------------------

def _is_v5e() -> bool:
    try:
        kind = jax.devices()[0].device_kind.lower()
    except Exception:
        return False
    return ("v5e" in kind) or ("v5 lite" in kind) or ("v5lite" in kind)


def _vmem_budget_bytes() -> int:
    """Generation-aware scoped-VMEM budget."""
    try:
        cap = int(pltpu.get_tpu_info().vmem_capacity_bytes)
    except Exception:
        cap = 128 << 20
    if cap <= (64 << 20):      # v7x: 64 MiB physical per TensorCore
        return 46 << 20
    return 100 << 20           # v5e / v6e: 128 MiB physical


def _pick_inner_tile(inner: int, target: int) -> int:
    """Largest multiple of 128 that evenly divides `inner` and is <= target."""
    if inner < 128 or inner % 128 != 0:
        return inner
    ti = min(max((target // 128) * 128, 128), inner)
    while inner % ti != 0:
        ti -= 128
    return ti


def _pick_token_tile(T: int, target: int):
    """Return (tm, T_pad).  Prefers tiles that avoid a wrapper-side pad."""
    target = max(8, (target // 8) * 8)
    if T % 8 != 0:
        if T <= target:
            # Full-extent token block (allowed even when not 8-aligned);
            # no pad, no output slice.
            return T, T
        t8 = ((T + 7) // 8) * 8
    else:
        t8 = T
    tm = min(target, t8)
    if t8 % tm == 0:
        return tm, t8
    # Search downward for a multiple-of-8 divisor of t8 close to target.
    cand = tm - (tm % 8)
    while cand >= 8:
        if t8 % cand == 0:
            break
        cand -= 8
    if cand >= max(8, tm // 2):
        return cand, t8
    # Give up on divisibility: pad to a multiple of tm.
    n_t = pl.cdiv(t8, tm)
    return tm, n_t * tm


# ----------------------------------------------------------------------------
# Wrapper
# ----------------------------------------------------------------------------

def gpt2_mlp(x, w_fc, b_fc, w_proj, b_proj, *, tm=None, ti=None,
             vmem_limit_bytes=None):
    """GPT2MLP forward: gelu_new(x @ W_fc + b_fc) @ W_proj + b_proj.

    x: [T, H]; w_fc: [H, I]; b_fc: [I]; w_proj: [I, H]; b_proj: [H].
    For production use bf16 activations/weights (fp32 accumulation is kept).
    """
    T, H = x.shape
    I = w_fc.shape[1]

    bx = jnp.dtype(x.dtype).itemsize
    bw = jnp.dtype(w_fc.dtype).itemsize
    bb1 = jnp.dtype(b_fc.dtype).itemsize
    bb2 = jnp.dtype(b_proj.dtype).itemsize

    is_v5e = _is_v5e()
    budget = (int(vmem_limit_bytes) if vmem_limit_bytes is not None
              else _vmem_budget_bytes())
    margin = 4 << 20

    # bf16 GELU on v6e/v7x (bf16 VPU/EUP); fp32 on v5e or with fp32 weights.
    act_dtype = (jnp.bfloat16
                 if (jnp.dtype(w_fc.dtype) == jnp.bfloat16 and not is_v5e)
                 else jnp.float32)

    # Token tile: v5e saturates its MXU near 256 rows; v6e/v7x want larger
    # tiles so weight streaming stays above the compute-bound knee.
    tm_target = tm if tm is not None else (256 if is_v5e else 512)
    tm_, T_pad = _pick_token_tile(T, tm_target)

    def ws_fused(t):
        return (2 * t * H * bx          # x tiles (double-buffered)
                + 2 * H * I * bw        # W_fc (counted x2 conservatively)
                + 2 * I * bb1
                + 2 * I * H * bw        # W_proj
                + 2 * H * bb2
                + 2 * t * H * bx)       # out tiles

    def ws_stream(t, s):
        return (2 * (t * H * bx + H * s * bw + s * bb1 + s * H * bw
                     + H * bb2 + t * H * bx)
                + t * H * 4)            # fp32 accumulator scratch

    # Prefer full weight residency (weights fetched from HBM once per call).
    want_fused = (ti is None) or (ti >= I)
    use_fused = want_fused and (ws_fused(tm_) + margin <= budget)

    ti_ = I
    n_k = 1
    if not use_fused:
        ti_ = _pick_inner_tile(I, ti if ti is not None else 1024)
        # Shrink ti first, then tm, until the working set fits the budget.
        for _ in range(16):
            if ws_stream(tm_, ti_) + margin <= budget:
                break
            if ti_ > 128 and I % 128 == 0:
                ti_ = _pick_inner_tile(I, max(128, ti_ // 2))
            elif tm_ > 8:
                tm_, T_pad = _pick_token_tile(T, max(8, tm_ // 2))
            else:
                break
        n_k = I // ti_

    if T_pad != T:
        x = jnp.pad(x, ((0, T_pad - T), (0, 0)))
    n_t = T_pad // tm_

    b_fc2 = b_fc.reshape(1, I)
    b_proj2 = b_proj.reshape(1, H)

    if use_fused:
        grid_spec = pltpu.PrefetchScalarGridSpec(
            num_scalar_prefetch=0,
            grid=(n_t,),
            in_specs=[
                pl.BlockSpec((tm_, H), lambda i: (i, 0)),   # x tile
                pl.BlockSpec((H, I), lambda i: (0, 0)),     # W_fc (resident)
                pl.BlockSpec((1, I), lambda i: (0, 0)),     # b_fc
                pl.BlockSpec((I, H), lambda i: (0, 0)),     # W_proj (resident)
                pl.BlockSpec((1, H), lambda i: (0, 0)),     # b_proj
            ],
            out_specs=pl.BlockSpec((tm_, H), lambda i: (i, 0)),
        )
        kernel = functools.partial(_mlp_fused_kernel, act_dtype=act_dtype)
        dims = ("parallel",)
    else:
        grid_spec = pltpu.PrefetchScalarGridSpec(
            num_scalar_prefetch=0,
            grid=(n_t, n_k),
            in_specs=[
                pl.BlockSpec((tm_, H), lambda i, k: (i, 0)),   # x tile
                pl.BlockSpec((H, ti_), lambda i, k: (0, k)),   # W_fc slice
                pl.BlockSpec((1, ti_), lambda i, k: (0, k)),   # b_fc slice
                pl.BlockSpec((ti_, H), lambda i, k: (k, 0)),   # W_proj slice
                pl.BlockSpec((1, H), lambda i, k: (0, 0)),     # b_proj
            ],
            out_specs=pl.BlockSpec((tm_, H), lambda i, k: (i, 0)),
            scratch_shapes=[pltpu.VMEM((tm_, H), jnp.float32)],
        )
        kernel = functools.partial(_mlp_stream_kernel, act_dtype=act_dtype)
        dims = ("parallel", "arbitrary")

    out = pl.pallas_call(
        kernel,
        out_shape=jax.ShapeDtypeStruct((T_pad, H), x.dtype),
        grid_spec=grid_spec,
        compiler_params=pltpu.CompilerParams(
            dimension_semantics=dims,
            vmem_limit_bytes=budget,
        ),
    )(x, w_fc, b_fc2, w_proj, b_proj2)

    return out[:T] if T_pad != T else out


def gpt2_mlp_ref(x, w_fc, b_fc, w_proj, b_proj):
    h = x @ w_fc + b_fc
    h = jax.nn.gelu(h, approximate=True)
    return h @ w_proj + b_proj


if __name__ == "__main__":
    # Small GPT2-ish config: hidden=32, intermediate=4*hidden=128.
    # T=20 is deliberately ragged to exercise the full-extent token block
    # (no pad / no slice) path.
    T, H = 20, 32
    I = 4 * H

    key = jax.random.PRNGKey(0)
    kx, k1, k2, k3, k4 = jax.random.split(key, 5)

    x = jax.random.normal(kx, (T, H), dtype=jnp.float32)
    w_fc = jax.random.normal(k1, (H, I), dtype=jnp.float32) * 0.02
    b_fc = jax.random.normal(k2, (I,), dtype=jnp.float32) * 0.02
    w_proj = jax.random.normal(k3, (I, H), dtype=jnp.float32) * 0.02
    b_proj = jax.random.normal(k4, (H,), dtype=jnp.float32) * 0.02

    out = gpt2_mlp(x, w_fc, b_fc, w_proj, b_proj)
    out = jax.block_until_ready(out)

    ref = gpt2_mlp_ref(x, w_fc, b_fc, w_proj, b_proj)
    assert out.shape == (T, H)
    assert jnp.allclose(out, ref, atol=1e-5, rtol=1e-5), "mismatch vs reference"

    print("KERNEL_OK")
</pallas_src>

<mosaic_0001>
module attributes {stable_mosaic.version = 11 : i64} {
  func.func @_mlp_fused_kernel(%arg0: i32, %arg1: memref<20x32xf32, #tpu.memory_space<vmem>>, %arg2: memref<32x128xf32, #tpu.memory_space<vmem>>, %arg3: memref<1x128xf32, #tpu.memory_space<vmem>>, %arg4: memref<128x32xf32, #tpu.memory_space<vmem>>, %arg5: memref<1x32xf32, #tpu.memory_space<vmem>>, %arg6: memref<20x32xf32, #tpu.memory_space<vmem>>) attributes {dimension_semantics = [#tpu.dimension_semantics<parallel>], iteration_bounds = array<i64: 1>, scalar_prefetch = 0 : i64, scratch_operands = 0 : i64, tpu.core_type = #tpu.core_type<tc>, window_params = [{transform_indices = @transform_0, window_bounds = array<i64: 20, 32>}, {pipeline_mode = #tpu.pipeline_mode<synchronous>, transform_indices = @transform_1, window_bounds = array<i64: 32, 128>}, {pipeline_mode = #tpu.pipeline_mode<synchronous>, transform_indices = @transform_2, window_bounds = array<i64: 1, 128>}, {pipeline_mode = #tpu.pipeline_mode<synchronous>, transform_indices = @transform_3, window_bounds = array<i64: 128, 32>}, {pipeline_mode = #tpu.pipeline_mode<synchronous>, transform_indices = @transform_4, window_bounds = array<i64: 1, 32>}, {transform_indices = @transform_5, window_bounds = array<i64: 20, 32>}]} {
    %c0 = arith.constant 0 : index
    %c0_0 = arith.constant 0 : index
    %0 = vector.load %arg1[%c0, %c0_0] : memref<20x32xf32, #tpu.memory_space<vmem>>, vector<20x32xf32>
    %c0_1 = arith.constant 0 : index
    %c0_2 = arith.constant 0 : index
    %1 = vector.load %arg2[%c0_1, %c0_2] : memref<32x128xf32, #tpu.memory_space<vmem>>, vector<32x128xf32>
    %cst = arith.constant dense<0.000000e+00> : vector<20x128xf32>
    %2 = tpu.matmul %0, %1, %cst {dimension_numbers = #tpu.dot_dimension_numbers<[1], [0], [0], [1], [0, 0, 1, 1], [], []>} : vector<20x32xf32>, vector<32x128xf32>, vector<20x128xf32> -> vector<20x128xf32>
    %c0_3 = arith.constant 0 : index
    %c0_4 = arith.constant 0 : index
    %3 = vector.load %arg3[%c0_3, %c0_4] : memref<1x128xf32, #tpu.memory_space<vmem>>, vector<1x128xf32>
    %4 = vector.broadcast %3 : vector<1x128xf32> to vector<20x128xf32>
    %5 = arith.addf %2, %4 : vector<20x128xf32>
    %6 = arith.mulf %5, %5 : vector<20x128xf32>
    %7 = arith.mulf %5, %6 : vector<20x128xf32>
    %cst_5 = arith.constant 4.471500e-02 : f32
    %8 = vector.broadcast %cst_5 : f32 to vector<20x128xf32>
    %9 = arith.mulf %8, %7 : vector<20x128xf32>
    %10 = arith.addf %5, %9 : vector<20x128xf32>
    %cst_6 = arith.constant 0.797884583 : f32
    %11 = vector.broadcast %cst_6 : f32 to vector<20x128xf32>
    %12 = arith.mulf %11, %10 : vector<20x128xf32>
    %13 = math.tanh %12 : vector<20x128xf32>
    %cst_7 = arith.constant 1.000000e+00 : f32
    %14 = vector.broadcast %cst_7 : f32 to vector<20x128xf32>
    %15 = arith.addf %14, %13 : vector<20x128xf32>
    %cst_8 = arith.constant 5.000000e-01 : f32
    %16 = vector.broadcast %cst_8 : f32 to vector<20x128xf32>
    %17 = arith.mulf %16, %15 : vector<20x128xf32>
    %18 = arith.mulf %5, %17 : vector<20x128xf32>
    %c0_9 = arith.constant 0 : index
    %c0_10 = arith.constant 0 : index
    %19 = vector.load %arg4[%c0_9, %c0_10] : memref<128x32xf32, #tpu.memory_space<vmem>>, vector<128x32xf32>
    %cst_11 = arith.constant dense<0.000000e+00> : vector<20x32xf32>
    %20 = tpu.matmul %18, %19, %cst_11 {dimension_numbers = #tpu.dot_dimension_numbers<[1], [0], [0], [1], [0, 0, 1, 1], [], []>} : vector<20x128xf32>, vector<128x32xf32>, vector<20x32xf32> -> vector<20x32xf32>
    %c0_12 = arith.constant 0 : index
    %c0_13 = arith.constant 0 : index
    %21 = vector.load %arg5[%c0_12, %c0_13] : memref<1x32xf32, #tpu.memory_space<vmem>>, vector<1x32xf32>
    %22 = vector.broadcast %21 : vector<1x32xf32> to vector<20x32xf32>
    %23 = arith.addf %20, %22 : vector<20x32xf32>
    %c0_14 = arith.constant 0 : index
    %c0_15 = arith.constant 0 : index
    %24 = vector.load %arg6[%c0_14, %c0_15] : memref<20x32xf32, #tpu.memory_space<vmem>>, vector<20x32xf32>
    tpu.vector_store %arg6[%c0_14, %c0_15], %23 {strides = array<i32>} : memref<20x32xf32, #tpu.memory_space<vmem>>, vector<20x32xf32>,
    return
  }
  func.func @transform_0(%arg0: i32) -> (i32, i32) {
    %c0_i32 = arith.constant 0 : i32
    %c0_i32_0 = arith.constant 0 : i32
    return %arg0, %c0_i32 : i32, i32
  }
  func.func @transform_1(%arg0: i32) -> (i32, i32) {
    %c0_i32 = arith.constant 0 : i32
    %c0_i32_0 = arith.constant 0 : i32
    %c0_i32_1 = arith.constant 0 : i32
    return %c0_i32, %c0_i32_0 : i32, i32
  }
  func.func @transform_2(%arg0: i32) -> (i32, i32) {
    %c0_i32 = arith.constant 0 : i32
    %c0_i32_0 = arith.constant 0 : i32
    %c0_i32_1 = arith.constant 0 : i32
    return %c0_i32, %c0_i32_0 : i32, i32
  }
  func.func @transform_3(%arg0: i32) -> (i32, i32) {
    %c0_i32 = arith.constant 0 : i32
    %c0_i32_0 = arith.constant 0 : i32
    %c0_i32_1 = arith.constant 0 : i32
    return %c0_i32, %c0_i32_0 : i32, i32
  }
  func.func @transform_4(%arg0: i32) -> (i32, i32) {
    %c0_i32 = arith.constant 0 : i32
    %c0_i32_0 = arith.constant 0 : i32
    %c0_i32_1 = arith.constant 0 : i32
    return %c0_i32, %c0_i32_0 : i32, i32
  }
  func.func @transform_5(%arg0: i32) -> (i32, i32) {
    %c0_i32 = arith.constant 0 : i32
    %c0_i32_0 = arith.constant 0 : i32
    return %arg0, %c0_i32 : i32, i32
  }
}

</mosaic_0001>

<llo_original>
// kernel: tpu_custom_call.1
$region0: #{tpu_custom_call.1}
  #allocation0 [shape = 'u32[]', space=smem, size = 0x4, offset = 0x4, fixed_abs, tag = 'smem constant byte address 0x4 - core index']
  #allocation1 [shape = 'u32[144,128]{1,0:T(1,128)}', space=vmem, size = 0x12000, scoped, tag = 'internal scratch']
  %s0 = inlined_call_operand.hbm [shape: f32[20,32], index: 0, kind: input, shape index: {}]
  %s1 = inlined_call_operand.hbm [shape: f32[32,128], index: 1, kind: input, shape index: {}]
  %s2 = inlined_call_operand.hbm [shape: f32[1,128], index: 2, kind: input, shape index: {}]
  %s3 = inlined_call_operand.hbm [shape: f32[128,32], index: 3, kind: input, shape index: {}]
  %s4 = inlined_call_operand.hbm [shape: f32[1,32], index: 4, kind: input, shape index: {}]
  %s5 = inlined_call_operand.hbm [shape: f32[20,32], index: 5, kind: output, shape index: {}]
  %s6 = sld [smem:[#allocation0]]
  $region50: #{tpu_custom_call.1} parent=0
    _
  %s8 = ssub.s32 1, %s6
  %s9 = scalar_select 0, %s8, %s6
  $region1: #{tpu_custom_call.1} parent=0
    #allocation2 [shape = 'u8[12288]{0}', space=vmem, size = 0x3000, scoped, tag = 'input window, operand 0, single buffered']
    #allocation3 [shape = 's32[1]{0}', space=sflag, size = 0x4, scoped, tag = 'scoped memory for tpu_custom_call.1']
    #allocation4 [shape = 's32[1]{0}', space=sflag, size = 0x4, scoped, tag = 'scoped memory for tpu_custom_call.1']
    #allocation5 [shape = 'u8[16384]{0}', space=vmem, size = 0x4000, scoped, tag = 'input window, operand 1, single buffered']
    #allocation6 [shape = 's32[1]{0}', space=sflag, size = 0x4, scoped, tag = 'scoped memory for tpu_custom_call.1']
    #allocation7 [shape = 'u8[512]{0}', space=vmem, size = 0x400, scoped, tag = 'input window, operand 2, single buffered']
    #allocation8 [shape = 'u8[65536]{0}', space=vmem, size = 0x10000, scoped, tag = 'input window, operand 3, single buffered']
    #allocation9 [shape = 's32[1]{0}', space=sflag, size = 0x4, scoped, tag = 'scoped memory for tpu_custom_call.1']
    #allocation10 [shape = 'u8[512]{0}', space=vmem, size = 0x400, scoped, tag = 'input window, operand 4, single buffered']
    #allocation11 [shape = 'u8[12288]{0}', space=vmem, size = 0x3000, scoped, tag = 'output window, operand 0, single buffered']
    %10 = vsyncpa [#allocation3], 0
    %11 = vsyncpa [#allocation6], 0
    %12 = vsyncpa [#allocation9], 0
    %13 = vsyncpa [#allocation4], 0
    // Predicated region
    $region2: #{tpu_custom_call.1} parent=1 // pred_check
      _
    $region3: #{tpu_custom_call.1} parent=1 // pred_check_branch
      %15 = sbr.rel (0) target = $region5
    $region4: #{tpu_custom_call.1} parent=1 // pred_region
      %s17 = ssub.s32 384, 384
      %18 = vsyncadd [#allocation3], %s17
      %s19 = sshll.u32 [#allocation2], 4
      %s20 = int_to_ptr.vmem [resolvable:$true] %s19
      %25 = dma.hbm_to_vmem [thread:$0]  %s0, 384, %s20, [#allocation3], 128, 128, 8
    $region5: #{tpu_custom_call.1} parent=1 // pred_fallthru
      _
    // Predicated region
    $region6: #{tpu_custom_call.1} parent=1 // pred_check
      _
    $region7: #{tpu_custom_call.1} parent=1 // pred_check_branch
      %27 = sbr.rel (0) target = $region9
    $region8: #{tpu_custom_call.1} parent=1 // pred_region
      %s29 = ssub.s32 512, 512
      %30 = vsyncadd [#allocation6], %s29
      %s31 = sshll.u32 [#allocation5], 4
      %s32 = int_to_ptr.vmem [resolvable:$true] %s31
      %37 = dma.hbm_to_vmem [thread:$0]  %s1, 512, %s32, [#allocation6], 128, 128, 8
    $region9: #{tpu_custom_call.1} parent=1 // pred_fallthru
      _
    // Predicated region
    $region10: #{tpu_custom_call.1} parent=1 // pred_check
      _
    $region11: #{tpu_custom_call.1} parent=1 // pred_check_branch
      %39 = sbr.rel (0) target = $region13
    $region12: #{tpu_custom_call.1} parent=1 // pred_region
      %s41 = ssub.s32 16, 16
      %42 = vsyncadd [#allocation6], %s41
      %s44 = sshll.u32 [#allocation7], 4
      %s45 = int_to_ptr.vmem [resolvable:$true] %s44
      %47 = dma.hbm_to_vmem [thread:$0]  %s2, 16, %s45, [#allocation6]
    $region13: #{tpu_custom_call.1} parent=1 // pred_fallthru
      _
    // Predicated region
    $region14: #{tpu_custom_call.1} parent=1 // pred_check
      _
    $region15: #{tpu_custom_call.1} parent=1 // pred_check_branch
      %49 = sbr.rel (0) target = $region17
    $region16: #{tpu_custom_call.1} parent=1 // pred_region
      %s51 = ssub.s32 2048, 2048
      %52 = vsyncadd [#allocation9], %s51
      %s53 = sshll.u32 [#allocation8], 4
      %s54 = int_to_ptr.vmem [resolvable:$true] %s53
      %59 = dma.hbm_to_vmem [thread:$0]  %s3, 2048, %s54, [#allocation9], 128, 128, 8
    $region17: #{tpu_custom_call.1} parent=1 // pred_fallthru
      _
    // Predicated region
    $region18: #{tpu_custom_call.1} parent=1 // pred_check
      _
    $region19: #{tpu_custom_call.1} parent=1 // pred_check_branch
      %61 = sbr.rel (0) target = $region21
    $region20: #{tpu_custom_call.1} parent=1 // pred_region
      %s63 = ssub.s32 16, 16
      %64 = vsyncadd [#allocation9], %s63
      %s66 = sshll.u32 [#allocation10], 4
      %s67 = int_to_ptr.vmem [resolvable:$true] %s66
      %69 = dma.hbm_to_vmem [thread:$0]  %s4, 16, %s67, [#allocation9]
    $region21: #{tpu_custom_call.1} parent=1 // pred_fallthru
      _
    // Predicated region
    $region22: #{tpu_custom_call.1} parent=1 // pred_check
      _
    $region23: #{tpu_custom_call.1} parent=1 // pred_check_branch
      %71 = sbr.rel (0) target = $region25
    $region24: #{tpu_custom_call.1} parent=1 // pred_region
      %72 = dma.done [#allocation3], 384
    $region25: #{tpu_custom_call.1} parent=1 // pred_fallthru
      _
    // Predicated region
    $region26: #{tpu_custom_call.1} parent=1 // pred_check
      _
    $region27: #{tpu_custom_call.1} parent=1 // pred_check_branch
      %74 = sbr.rel (0) target = $region29
    $region28: #{tpu_custom_call.1} parent=1 // pred_region
      %75 = dma.done [#allocation6], 512
    $region29: #{tpu_custom_call.1} parent=1 // pred_fallthru
      _
    // Predicated region
    $region30: #{tpu_custom_call.1} parent=1 // pred_check
      _
    $region31: #{tpu_custom_call.1} parent=1 // pred_check_branch
      %77 = sbr.rel (0) target = $region33
    $region32: #{tpu_custom_call.1} parent=1 // pred_region
      %78 = dma.done [#allocation6], 16
    $region33: #{tpu_custom_call.1} parent=1 // pred_fallthru
      _
    // Predicated region
    $region34: #{tpu_custom_call.1} parent=1 // pred_check
      _
    $region35: #{tpu_custom_call.1} parent=1 // pred_check_branch
      %80 = sbr.rel (0) target = $region37
    $region36: #{tpu_custom_call.1} parent=1 // pred_region
      %81 = dma.done [#allocation9], 2048
    $region37: #{tpu_custom_call.1} parent=1 // pred_fallthru
      _
    // Predicated region
    $region38: #{tpu_custom_call.1} parent=1 // pred_check
      _
    $region39: #{tpu_custom_call.1} parent=1 // pred_check_branch
      %83 = sbr.rel (0) target = $region41
    $region40: #{tpu_custom_call.1} parent=1 // pred_region
      %84 = dma.done [#allocation9], 16
    $region41: #{tpu_custom_call.1} parent=1 // pred_fallthru
      _
    %v85 = vld [vmem:[#allocation2] sm:$0xff]
    %v86 = vld [vmem:[#allocation2 + $0x8] sm:$0xff]
    %v87 = vld [vmem:[#allocation2 + $0x10] sm:$0xf]
    %v88 = vld [vmem:[#allocation5] sm:$0xff]
    %v89 = vld [vmem:[#allocation5 + $0x8] sm:$0xff]
    %v90 = vld [vmem:[#allocation5 + $0x10] sm:$0xff]
    %v91 = vld [vmem:[#allocation5 + $0x18] sm:$0xff]
    %v92 = vld [vmem:[#allocation7] sm:$0x1]
    %v94 = vlaneseq
    %v95 = vshrl.u32 %v94, 7
    %v96 = vsub.s32 0, %v95
    %v97 = vrot.slane %v92, %v96
    %vm99 = vcmask 261120
    %v101 = vsel %vm99, %v85, 0
    %v104 = vsel %vm99, %v86, 0
    %v107 = vsel %vm99, %v87, 0
    %109 = vmatprep.subr.mxu0 0.0
    %110 = vmatpush1.msra.mxu0 %v88
    %111 = vmatprep.subr.mxu0 0.0
    %112 = vmatpush1.msra.mxu0 %v89
    %113 = vmatprep.subr.mxu0 0.0
    %114 = vmatpush1.msra.mxu0 %v90
    %115 = vmatprep.subr.mxu0 0.0
    %116 = vmatpush1.msra.mxu0 %v91
    %117 = vmatprep.subr.mxu0 0.0
    %118 = vmatpush1.msra.mxu0 0.0
    %119 = vmatprep.subr.mxu0 0.0
    %120 = vmatpush1.msra.mxu0 0.0
    %121 = vmatprep.subr.mxu0 0.0
    %122 = vmatpush1.msra.mxu0 0.0
    %123 = vmatprep.subr.mxu0 0.0
    %124 = vmatpush1.msra.mxu0 0.0
    %125 = vmatprep.subr.mxu0 0.0
    %126 = vmatpush1.msra.mxu0 0.0
    %127 = vmatprep.subr.mxu0 0.0
    %128 = vmatpush1.msra.mxu0 0.0
    %129 = vmatprep.subr.mxu0 0.0
    %130 = vmatpush1.msra.mxu0 0.0
    %131 = vmatprep.subr.mxu0 0.0
    %132 = vmatpush1.msra.mxu0 0.0
    %133 = vmatprep.subr.mxu0 0.0
    %134 = vmatpush1.msra.mxu0 0.0
    %135 = vmatprep.subr.mxu0 0.0
    %136 = vmatpush1.msra.mxu0 0.0
    %137 = vmatprep.subr.mxu0 0.0
    %138 = vmatpush1.msra.mxu0 0.0
    %139 = vmatprep.subr.mxu0 0.0
    %140 = vmatpush1.msra.mxu0 0.0
    %141 = vmatprep.subr.mxu0 0.0
    %142 = vmatpush1.msra.mxu0 0.0
    %143 = vmatprep.subr.mxu0 0.0
    %144 = vmatpush1.msra.mxu0 0.0
    %145 = vmatprep.subr.mxu0 0.0
    %146 = vmatpush1.msra.mxu0 0.0
    %147 = vmatprep.subr.mxu0 0.0
    %148 = vmatpush1.msra.mxu0 0.0
    %149 = vmatprep.subr.mxu0 0.0
    %150 = vmatpush1.msra.mxu0 0.0
    %151 = vmatprep.subr.mxu0 0.0
    %152 = vmatpush1.msra.mxu0 0.0
    %153 = vmatprep.subr.mxu0 0.0
    %154 = vmatpush1.msra.mxu0 0.0
    %155 = vmatprep.subr.mxu0 0.0
    %156 = vmatpush1.msra.mxu0 0.0
    %157 = vmatprep.subr.mxu0 0.0
    %158 = vmatpush1.msra.mxu0 0.0
    %159 = vmatprep.subr.mxu0 0.0
    %160 = vmatpush1.msra.mxu0 0.0
    %161 = vmatprep.subr.mxu0 0.0
    %162 = vmatpush1.msra.mxu0 0.0
    %163 = vmatprep.subr.mxu0 0.0
    %164 = vmatpush1.msra.mxu0 0.0
    %165 = vmatprep.subr.mxu0 0.0
    %166 = vmatpush1.msra.mxu0 0.0
    %167 = vmatprep.subr.mxu0 0.0
    %168 = vmatpush1.msra.mxu0 0.0
    %169 = vmatprep.subr.mxu0 0.0
    %170 = vmatpush1.msra.mxu0 0.0
    %171 = vmatprep.subr.mxu0 0.0
    %172 = vmatpush1.msra.mxu0 0.0
    %173 = vmatprep.mubr.f32.mxu0 0.0
    %174 = vmatmul.mubr.f32.gmra.mrb[0].mxu0 %v101
    %v175 = vpop.f32.mrb[0].mxu0
    %v176 = vadd.f32 %v97, %v175
    %v177 = vpop.f32.mrb[0].mxu0
    %178 = vmatprep.mubr.f32.mxu0 0.0
    %179 = vmatmul.mubr.f32.gmra.mrb[0].mxu0 %v104
    %v180 = vpop.f32.mrb[0].mxu0
    %v181 = vadd.f32 %v97, %v180
    %v182 = vpop.f32.mrb[0].mxu0
    %183 = vmatprep.mubr.f32.mxu0 0.0
    %184 = vmatmul.mubr.f32.gmra.mrb[0].mxu0 %v107
    %v185 = vpop.f32.mrb[0].mxu0
    %v186 = vadd.f32 %v97, %v185
    %v187 = vpop.f32.mrb[0].mxu0
    %188 = vdwg.mxu0
    %v189 = vmul.f32 %v176, %v176
    %v190 = vmul.f32 %v181, %v181
    %v191 = vmul.f32 %v186, %v186
    %v192 = vmul.f32 %v176, %v189
    %v193 = vmul.f32 %v181, %v190
    %v194 = vmul.f32 %v186, %v191
    %v195 = vmul.f32 %v192, 0.044715
    %v196 = vmul.f32 %v193, 0.044715
    %v197 = vmul.f32 %v194, 0.044715
    %v198 = vadd.f32 %v176, %v195
    %v199 = vadd.f32 %v181, %v196
    %v200 = vadd.f32 %v186, %v197
    %v201 = vmul.f32 %v198, 0.7978846
    %v202 = vmul.f32 %v199, 0.7978846
    %v203 = vmul.f32 %v200, 0.7978846
    %v204 = vtanh.pop %v201
    %v205 = vtanh.pop %v202
    %v206 = vtanh.pop %v203
    %v207 = vadd.f32 %v204, 1.0
    %v208 = vadd.f32 %v205, 1.0
    %v209 = vadd.f32 %v206, 1.0
    %v210 = vmul.f32 %v207, 0.5
    %v211 = vmul.f32 %v208, 0.5
    %v212 = vmul.f32 %v209, 0.5
    %v213 = vmul.f32 %v176, %v210
    %v214 = vmul.f32 %v181, %v211
    %v215 = vmul.f32 %v186, %v212
    %v216 = vld [vmem:[#allocation8] sm:$0xff]
    %v217 = vld [vmem:[#allocation8 + $0x8] sm:$0xff]
    %v218 = vld [vmem:[#allocation8 + $0x10] sm:$0xff]
    %v219 = vld [vmem:[#allocation8 + $0x18] sm:$0xff]
    %v220 = vld [vmem:[#allocation8 + $0x20] sm:$0xff]
    %v221 = vld [vmem:[#allocation8 + $0x28] sm:$0xff]
    %v222 = vld [vmem:[#allocation8 + $0x30] sm:$0xff]
    %v223 = vld [vmem:[#allocation8 + $0x38] sm:$0xff]
    %v224 = vld [vmem:[#allocation8 + $0x40] sm:$0xff]
    %v225 = vld [vmem:[#allocation8 + $0x48] sm:$0xff]
    %v226 = vld [vmem:[#allocation8 + $0x50] sm:$0xff]
    %v227 = vld [vmem:[#allocation8 + $0x58] sm:$0xff]
    %v228 = vld [vmem:[#allocation8 + $0x60] sm:$0xff]
    %v229 = vld [vmem:[#allocation8 + $0x68] sm:$0xff]
    %v230 = vld [vmem:[#allocation8 + $0x70] sm:$0xff]
    %v231 = vld [vmem:[#allocation8 + $0x78] sm:$0xff]
    %v232 = vld [vmem:[#allocation10] sm:$0x1]
    %v234 = vlaneseq
    %v235 = vshrl.u32 %v234, 7
    %v236 = vsub.s32 0, %v235
    %v237 = vrot.slane %v232, %v236
    %239 = vmatprep.subr.mxu0 0.0
    %240 = vmatpush1.msra.mxu0 %v216
    %241 = vmatprep.subr.mxu0 0.0
    %242 = vmatpush1.msra.mxu0 %v217
    %243 = vmatprep.subr.mxu0 0.0
    %244 = vmatpush1.msra.mxu0 %v218
    %245 = vmatprep.subr.mxu0 0.0
    %246 = vmatpush1.msra.mxu0 %v219
    %247 = vmatprep.subr.mxu0 0.0
    %248 = vmatpush1.msra.mxu0 %v220
    %249 = vmatprep.subr.mxu0 0.0
    %250 = vmatpush1.msra.mxu0 %v221
    %251 = vmatprep.subr.mxu0 0.0
    %252 = vmatpush1.msra.mxu0 %v222
    %253 = vmatprep.subr.mxu0 0.0
    %254 = vmatpush1.msra.mxu0 %v223
    %255 = vmatprep.subr.mxu0 0.0
    %256 = vmatpush1.msra.mxu0 %v224
    %257 = vmatprep.subr.mxu0 0.0
    %258 = vmatpush1.msra.mxu0 %v225
    %259 = vmatprep.subr.mxu0 0.0
    %260 = vmatpush1.msra.mxu0 %v226
    %261 = vmatprep.subr.mxu0 0.0
    %262 = vmatpush1.msra.mxu0 %v227
    %263 = vmatprep.subr.mxu0 0.0
    %264 = vmatpush1.msra.mxu0 %v228
    %265 = vmatprep.subr.mxu0 0.0
    %266 = vmatpush1.msra.mxu0 %v229
    %267 = vmatprep.subr.mxu0 0.0
    %268 = vmatpush1.msra.mxu0 %v230
    %269 = vmatprep.subr.mxu0 0.0
    %270 = vmatpush1.msra.mxu0 %v231
    %271 = vmatprep.subr.mxu0 0.0
    %272 = vmatpush1.msra.mxu0 0.0
    %273 = vmatprep.subr.mxu0 0.0
    %274 = vmatpush1.msra.mxu0 0.0
    %275 = vmatprep.subr.mxu0 0.0
    %276 = vmatpush1.msra.mxu0 0.0
    %277 = vmatprep.subr.mxu0 0.0
    %278 = vmatpush1.msra.mxu0 0.0
    %279 = vmatprep.subr.mxu0 0.0
    %280 = vmatpush1.msra.mxu0 0.0
    %281 = vmatprep.subr.mxu0 0.0
    %282 = vmatpush1.msra.mxu0 0.0
    %283 = vmatprep.subr.mxu0 0.0
    %284 = vmatpush1.msra.mxu0 0.0
    %285 = vmatprep.subr.mxu0 0.0
    %286 = vmatpush1.msra.mxu0 0.0
    %287 = vmatprep.subr.mxu0 0.0
    %288 = vmatpush1.msra.mxu0 0.0
    %289 = vmatprep.subr.mxu0 0.0
    %290 = vmatpush1.msra.mxu0 0.0
    %291 = vmatprep.subr.mxu0 0.0
    %292 = vmatpush1.msra.mxu0 0.0
    %293 = vmatprep.subr.mxu0 0.0
    %294 = vmatpush1.msra.mxu0 0.0
    %295 = vmatprep.subr.mxu0 0.0
    %296 = vmatpush1.msra.mxu0 0.0
    %297 = vmatprep.subr.mxu0 0.0
    %298 = vmatpush1.msra.mxu0 0.0
    %299 = vmatprep.subr.mxu0 0.0
    %300 = vmatpush1.msra.mxu0 0.0
    %301 = vmatprep.subr.mxu0 0.0
    %302 = vmatpush1.msra.mxu0 0.0
    %303 = vmatprep.mubr.f32.mxu0 0.0
    %304 = vmatmul.mubr.f32.gmra.mrb[0].mxu0 %v213
    %v305 = vpop.f32.mrb[0].mxu0
    %v306 = vadd.f32 %v237, %v305
    %v307 = vpop.f32.mrb[0].mxu0
    %308 = vmatprep.mubr.f32.mxu0 0.0
    %309 = vmatmul.mubr.f32.gmra.mrb[0].mxu0 %v214
    %v310 = vpop.f32.mrb[0].mxu0
    %v311 = vadd.f32 %v237, %v310
    %v312 = vpop.f32.mrb[0].mxu0
    %313 = vmatprep.mubr.f32.mxu0 0.0
    %314 = vmatmul.mubr.f32.gmra.mrb[0].mxu0 %v215
    %v315 = vpop.f32.mrb[0].mxu0
    %v316 = vadd.f32 %v237, %v315
    %v317 = vpop.f32.mrb[0].mxu0
    %318 = vdwg.mxu0
    %319 = vst.msk [vmem:[#allocation11] sm:$0xff] %vm99, %v306
    %320 = vst.msk [vmem:[#allocation11 + $0x8] sm:$0xff] %vm99, %v311
    %vm321 = vcmask 257024
    %322 = vst.msk [vmem:[#allocation11 + $0x10] sm:$0xf] %vm321, %v316
    // Predicated region
    $region42: #{tpu_custom_call.1} parent=1 // pred_check
      _
    $region43: #{tpu_custom_call.1} parent=1 // pred_check_branch
      %324 = sbr.rel (0) target = $region45
    $region44: #{tpu_custom_call.1} parent=1 // pred_region
      %s326 = ssub.s32 384, 384
      %327 = vsyncadd [#allocation4], %s326
      %s328 = sshll.u32 [#allocation11], 4
      %s329 = int_to_ptr.vmem [resolvable:$true] %s328
      %334 = dma.vmem_to_hbm [thread:$0]  %s329, 384, %s5, [#allocation4], 128, 128, 8
    $region45: #{tpu_custom_call.1} parent=1 // pred_fallthru
      _
    // Predicated region
    $region46: #{tpu_custom_call.1} parent=1 // pred_check
      _
    $region47: #{tpu_custom_call.1} parent=1 // pred_check_branch
      %336 = sbr.rel (0) target = $region49
    $region48: #{tpu_custom_call.1} parent=1 // pred_region
      %337 = dma.done [#allocation4], 384
    $region49: #{tpu_custom_call.1} parent=1 // pred_fallthru
      _
    %338 = vsyncpa [#allocation3], 1
    %339 = vsyncpa [#allocation6], 1
    %340 = vsyncpa [#allocation9], 1
    %341 = vsyncpa [#allocation4], 1

</llo_original>
